<compile_context>
chip_gen: v6e
topology: v6e:2x2x1
jax: 0.10.0
libtpu: 0.0.40
codegen_flags: <defaults>
</compile_context>

<pallas_src>
import jax
import jax.numpy as jnp
from jax.experimental import pallas as pl
from jax.experimental.pallas import tpu as pltpu

_LANE = 128
_SUBLANE = 8


def _round_up(a, m):
    return ((a + m - 1) // m) * m


# --------------------------------------------------------------------------
# Kernels
# --------------------------------------------------------------------------
def _mlp_kernel_f32_out(x_ref, w_ref, b_ref, o_ref):
    """Accumulate directly into the K-resident f32 output block (no scratch)."""
    k = pl.program_id(2)
    partial = jnp.dot(x_ref[...], w_ref[...], preferred_element_type=jnp.float32)

    @pl.when(k == 0)
    def _init():
        o_ref[...] = partial

    @pl.when(k > 0)
    def _accum():
        o_ref[...] += partial

    @pl.when(k == pl.num_programs(2) - 1)
    def _epilogue():
        o_ref[...] = jnp.maximum(o_ref[...] + b_ref[...], 0.0)


def _mlp_kernel_acc(x_ref, w_ref, b_ref, o_ref, acc_ref):
    """f32 VMEM accumulator path for narrow (e.g. bf16) output dtypes."""
    k = pl.program_id(2)

    @pl.when(k == 0)
    def _init():
        acc_ref[...] = jnp.zeros_like(acc_ref)

    acc_ref[...] += jnp.dot(x_ref[...], w_ref[...],
                            preferred_element_type=jnp.float32)

    @pl.when(k == pl.num_programs(2) - 1)
    def _epilogue():
        y = acc_ref[...] + b_ref[...]
        o_ref[...] = jnp.maximum(y, 0.0).astype(o_ref.dtype)


# --------------------------------------------------------------------------
# Planning / preprocessing (hoisted out of the per-call path)
# --------------------------------------------------------------------------
def _vmem_limits():
    """(tile budget bytes, vmem_limit_bytes) derived from the chip's VMEM."""
    cap = 64 * 1024 * 1024  # conservative default = v7x per-TC VMEM
    try:
        info = pltpu.get_tpu_info()
        cap = int(getattr(info, "vmem_capacity_bytes", cap))
    except Exception:
        pass
    limit = min(int(cap * 0.75), 112 * 1024 * 1024)   # headroom for compiler scratch
    budget = int(limit * 0.85)                         # headroom inside the limit
    return budget, limit


def plan_tiles(batch, in_features, out_features, out_dtype=jnp.float32):
    """Pick (tm, tn, tk) and padded dims so double-buffered tiles fit VMEM."""
    out_bytes = jnp.dtype(out_dtype).itemsize
    budget, limit = _vmem_limits()

    # M tile: a single block when the batch is modest so the weight streams
    # from HBM exactly once; otherwise 256 rows (full MXU height on v6e/v7x).
    mp0 = _round_up(max(batch, 1), _SUBLANE)
    tm = mp0 if mp0 <= 512 else 256

    # N tile: lane-aligned, up to 512 wide (keeps >=2 N blocks for megacore
    # sharding on v7x when Out is large).
    tn = min(_round_up(out_features, _LANE), 512)

    # K tile: as large as VMEM allows, ideally the full (padded) K.
    kp_full = _round_up(in_features, _LANE)

    def fits(tm_, tn_, tk_):
        x_buf = 2 * tm_ * tk_ * 2          # bf16 x, double-buffered
        w_buf = 2 * tk_ * tn_ * 2          # bf16 W^T, double-buffered
        o_buf = 2 * tm_ * tn_ * out_bytes  # output block, double-buffered
        b_buf = 2 * tn_ * 4                # bias block
        acc = tm_ * tn_ * 4                # worst case (scratch path)
        return x_buf + w_buf + o_buf + b_buf + acc <= budget

    tk = kp_full
    while tk > _LANE and not fits(tm, tn, tk):
        tk = max(_LANE, _round_up(tk // 2, _LANE))
    while tn > _LANE and not fits(tm, tn, tk):
        tn = max(_LANE, _round_up(tn // 2, _LANE))
    while tm > _SUBLANE and not fits(tm, tn, tk):
        tm = max(_SUBLANE, _round_up(tm // 2, _SUBLANE))

    return {
        "tm": tm, "tn": tn, "tk": tk,
        "Kp": _round_up(in_features, tk),
        "Np": _round_up(out_features, tn),
        "vmem_limit": limit,
    }


def prepare_params(weight, bias, plan, compute_dtype=jnp.bfloat16):
    """One-time transpose + pad + cast of Linear params (do this at model init)."""
    out_features, in_features = weight.shape
    Kp, Np = plan["Kp"], plan["Np"]

    w_p = weight.T
    if (Kp, Np) != (in_features, out_features):
        w_p = jnp.pad(w_p, ((0, Kp - in_features), (0, Np - out_features)))
    w_p = w_p.astype(compute_dtype)

    b_p = bias.reshape(1, -1).astype(jnp.float32)
    if Np != out_features:
        b_p = jnp.pad(b_p, ((0, 0), (0, Np - out_features)))
    return w_p, b_p


# --------------------------------------------------------------------------
# Forward
# --------------------------------------------------------------------------
def simple_mlp_forward(x, w_p, b_p, out_features, plan, *,
                       out_dtype=None, compute_dtype=jnp.bfloat16):
    """relu(x @ W^T + b) with pre-transformed padded params (w_p, b_p)."""
    B, In = x.shape
    out_dtype = jnp.dtype(out_dtype or x.dtype)
    tm, tn, tk = plan["tm"], plan["tn"], plan["tk"]
    Kp, Np = plan["Kp"], plan["Np"]
    Mp = _round_up(B, tm)

    # Activation pad is a no-op when already tile-aligned.
    x_p = x
    if (Mp, Kp) != (B, In):
        x_p = jnp.pad(x_p, ((0, Mp - B), (0, Kp - In)))
    x_p = x_p.astype(compute_dtype)

    grid = (Mp // tm, Np // tn, Kp // tk)

    if out_dtype == jnp.float32:
        kernel = _mlp_kernel_f32_out
        scratch = []
    else:
        kernel = _mlp_kernel_acc
        scratch = [pltpu.VMEM((tm, tn), jnp.float32)]

    out_p = pl.pallas_call(
        kernel,
        out_shape=jax.ShapeDtypeStruct((Mp, Np), out_dtype),
        grid_spec=pltpu.PrefetchScalarGridSpec(
            num_scalar_prefetch=0,
            grid=grid,
            in_specs=[
                pl.BlockSpec((tm, tk), lambda i, j, k: (i, k)),   # x tile
                pl.BlockSpec((tk, tn), lambda i, j, k: (k, j)),   # W^T tile
                pl.BlockSpec((1, tn), lambda i, j, k: (0, j)),    # bias (K-resident)
            ],
            out_specs=pl.BlockSpec((tm, tn), lambda i, j, k: (i, j)),
            scratch_shapes=scratch,
        ),
        compiler_params=pltpu.CompilerParams(
            dimension_semantics=("parallel", "parallel", "arbitrary"),
            vmem_limit_bytes=plan["vmem_limit"],
        ),
    )(x_p, w_p, b_p)

    if (Mp, Np) == (B, out_features):
        return out_p
    return out_p[:B, :out_features]


def simple_mlp(x, weight, bias, *, force_pallas=False, compute_dtype=jnp.bfloat16):
    """Convenience one-shot forward of simpleMLP.forward (plans + prepares inline).

    For production use, call plan_tiles()/prepare_params() once at init and
    simple_mlp_forward() per step to keep the weight transform off the hot path.
    """
    B, In = x.shape
    Out = weight.shape[0]
    # Tiny problems are pure launch/pad overhead: plain XLA wins.
    if not force_pallas and (B * In * Out) < (1 << 20):
        return jnp.maximum(x @ weight.T + bias, 0.0).astype(x.dtype)
    plan = plan_tiles(B, In, Out, out_dtype=x.dtype)
    w_p, b_p = prepare_params(weight, bias, plan, compute_dtype)
    return simple_mlp_forward(x, w_p, b_p, Out, plan, compute_dtype=compute_dtype)


if __name__ == "__main__":
    # Small shapes consistent with the module: batch=8, input_size=32, out_size=16.
    batch, input_size, out_size = 8, 32, 16

    key = jax.random.PRNGKey(0)
    kx, kw, kb = jax.random.split(key, 3)

    x = jax.random.normal(kx, (batch, input_size), dtype=jnp.float32)
    # PyTorch nn.Linear default init: uniform(-1/sqrt(in), 1/sqrt(in)).
    bound = 1.0 / (input_size ** 0.5)
    weight = jax.random.uniform(
        kw, (out_size, input_size), minval=-bound, maxval=bound, dtype=jnp.float32
    )
    bias = jax.random.uniform(
        kb, (out_size,), minval=-bound, maxval=bound, dtype=jnp.float32
    )

    # Force the Pallas path even at toy size so the kernel is exercised.
    out = simple_mlp(x, weight, bias, force_pallas=True)
    out = jax.block_until_ready(out)
    assert out.shape == (batch, out_size)

    # Reference with the same bf16-matmul / f32-accumulate numerics.
    ref_bf16 = jnp.maximum(
        jnp.dot(x.astype(jnp.bfloat16), weight.T.astype(jnp.bfloat16),
                preferred_element_type=jnp.float32) + bias,
        0.0,
    )
    assert jnp.allclose(out, ref_bf16, atol=1e-4, rtol=1e-4), "mismatch vs bf16 ref"

    # Loose sanity check against exact f32 nn.Linear + ReLU math.
    ref_f32 = jnp.maximum(x @ weight.T + bias, 0.0)
    assert jnp.allclose(out, ref_f32, atol=3e-2, rtol=3e-2), "mismatch vs f32 ref"

    print("KERNEL_OK")
</pallas_src>

<mosaic_0001>
module attributes {stable_mosaic.version = 11 : i64} {
  func.func @_mlp_kernel_f32_out(%arg0: i32, %arg1: i32, %arg2: i32, %arg3: memref<8x128xbf16, #tpu.memory_space<vmem>>, %arg4: memref<128x128xbf16, #tpu.memory_space<vmem>>, %arg5: memref<1x128xf32, #tpu.memory_space<vmem>>, %arg6: memref<8x128xf32, #tpu.memory_space<vmem>>) attributes {dimension_semantics = [#tpu.dimension_semantics<parallel>, #tpu.dimension_semantics<parallel>, #tpu.dimension_semantics<arbitrary>], iteration_bounds = array<i64: 1, 1, 1>, scalar_prefetch = 0 : i64, scratch_operands = 0 : i64, tpu.core_type = #tpu.core_type<tc>, window_params = [{transform_indices = @transform_0, window_bounds = array<i64: 8, 128>}, {transform_indices = @transform_1, window_bounds = array<i64: 128, 128>}, {transform_indices = @transform_2, window_bounds = array<i64: 1, 128>}, {transform_indices = @transform_3, window_bounds = array<i64: 8, 128>}]} {
    %c0 = arith.constant 0 : index
    %c0_0 = arith.constant 0 : index
    %0 = vector.load %arg3[%c0, %c0_0] : memref<8x128xbf16, #tpu.memory_space<vmem>>, vector<8x128xbf16>
    %c0_1 = arith.constant 0 : index
    %c0_2 = arith.constant 0 : index
    %1 = vector.load %arg4[%c0_1, %c0_2] : memref<128x128xbf16, #tpu.memory_space<vmem>>, vector<128x128xbf16>
    %cst = arith.constant dense<0.000000e+00> : vector<8x128xf32>
    %2 = tpu.matmul %0, %1, %cst {dimension_numbers = #tpu.dot_dimension_numbers<[1], [0], [0], [1], [0, 0, 1, 1], [], []>} : vector<8x128xbf16>, vector<128x128xbf16>, vector<8x128xf32> -> vector<8x128xf32>
    %c0_i32 = arith.constant 0 : i32
    %3 = arith.cmpi eq, %arg2, %c0_i32 : i32
    %4 = arith.extui %3 : i1 to i32
    %c0_i32_3 = arith.constant 0 : i32
    %5 = arith.cmpi ne, %4, %c0_i32_3 : i32
    scf.if %5 {
      %c0_8 = arith.constant 0 : index
      %c0_9 = arith.constant 0 : index
      %12 = vector.load %arg6[%c0_8, %c0_9] : memref<8x128xf32, #tpu.memory_space<vmem>>, vector<8x128xf32>
      tpu.vector_store %arg6[%c0_8, %c0_9], %2 {strides = array<i32>} : memref<8x128xf32, #tpu.memory_space<vmem>>, vector<8x128xf32>,
    } else {
    }
    %c0_i32_4 = arith.constant 0 : i32
    %6 = arith.cmpi sgt, %arg2, %c0_i32_4 : i32
    %7 = arith.extui %6 : i1 to i32
    %c0_i32_5 = arith.constant 0 : i32
    %8 = arith.cmpi ne, %7, %c0_i32_5 : i32
    scf.if %8 {
      %c0_8 = arith.constant 0 : index
      %c0_9 = arith.constant 0 : index
      %12 = vector.load %arg6[%c0_8, %c0_9] : memref<8x128xf32, #tpu.memory_space<vmem>>, vector<8x128xf32>
      %13 = arith.addf %12, %2 : vector<8x128xf32>
      %c0_10 = arith.constant 0 : index
      %c0_11 = arith.constant 0 : index
      %14 = vector.load %arg6[%c0_10, %c0_11] : memref<8x128xf32, #tpu.memory_space<vmem>>, vector<8x128xf32>
      tpu.vector_store %arg6[%c0_10, %c0_11], %13 {strides = array<i32>} : memref<8x128xf32, #tpu.memory_space<vmem>>, vector<8x128xf32>,
    } else {
    }
    %c0_i32_6 = arith.constant 0 : i32
    %9 = arith.cmpi eq, %arg2, %c0_i32_6 : i32
    %10 = arith.extui %9 : i1 to i32
    %c0_i32_7 = arith.constant 0 : i32
    %11 = arith.cmpi ne, %10, %c0_i32_7 : i32
    scf.if %11 {
      %c0_8 = arith.constant 0 : index
      %c0_9 = arith.constant 0 : index
      %12 = vector.load %arg6[%c0_8, %c0_9] : memref<8x128xf32, #tpu.memory_space<vmem>>, vector<8x128xf32>
      %c0_10 = arith.constant 0 : index
      %c0_11 = arith.constant 0 : index
      %13 = vector.load %arg5[%c0_10, %c0_11] : memref<1x128xf32, #tpu.memory_space<vmem>>, vector<1x128xf32>
      %14 = vector.broadcast %13 : vector<1x128xf32> to vector<8x128xf32>
      %15 = arith.addf %12, %14 : vector<8x128xf32>
      %cst_12 = arith.constant 0.000000e+00 : f32
      %16 = vector.broadcast %cst_12 : f32 to vector<8x128xf32>
      %17 = arith.maximumf %15, %16 : vector<8x128xf32>
      %c0_13 = arith.constant 0 : index
      %c0_14 = arith.constant 0 : index
      %18 = vector.load %arg6[%c0_13, %c0_14] : memref<8x128xf32, #tpu.memory_space<vmem>>, vector<8x128xf32>
      tpu.vector_store %arg6[%c0_13, %c0_14], %17 {strides = array<i32>} : memref<8x128xf32, #tpu.memory_space<vmem>>, vector<8x128xf32>,
    } else {
    }
    return
  }
  func.func @transform_0(%arg0: i32, %arg1: i32, %arg2: i32) -> (i32, i32) {
    %c0_i32 = arith.constant 0 : i32
    return %arg0, %arg2 : i32, i32
  }
  func.func @transform_1(%arg0: i32, %arg1: i32, %arg2: i32) -> (i32, i32) {
    %c0_i32 = arith.constant 0 : i32
    return %arg2, %arg1 : i32, i32
  }
  func.func @transform_2(%arg0: i32, %arg1: i32, %arg2: i32) -> (i32, i32) {
    %c0_i32 = arith.constant 0 : i32
    %c0_i32_0 = arith.constant 0 : i32
    return %c0_i32, %arg1 : i32, i32
  }
  func.func @transform_3(%arg0: i32, %arg1: i32, %arg2: i32) -> (i32, i32) {
    %c0_i32 = arith.constant 0 : i32
    return %arg0, %arg1 : i32, i32
  }
}

</mosaic_0001>

<llo_original>
// kernel: tpu_custom_call.1
$region0: #{tpu_custom_call.1}
  #allocation0 [shape = 'u32[]', space=smem, size = 0x4, offset = 0x4, fixed_abs, tag = 'smem constant byte address 0x4 - core index']
  #allocation1 [shape = 'u32[144,128]{1,0:T(1,128)}', space=vmem, size = 0x12000, scoped, tag = 'internal scratch']
  %s0 = inlined_call_operand.hbm [shape: bf16[8,128], index: 0, kind: input, shape index: {}]
  %s1 = inlined_call_operand.hbm [shape: bf16[128,128], index: 1, kind: input, shape index: {}]
  %s2 = inlined_call_operand.vmem [shape: f32[1,128], index: 2, kind: input, shape index: {}]
  %s3 = inlined_call_operand.hbm [shape: f32[8,128], index: 3, kind: output, shape index: {}]
  %s4 = sld [smem:[#allocation0]]
  $region42: #{tpu_custom_call.1} parent=0
    _
  %s6 = ssub.s32 1, %s4
  %s7 = scalar_select 0, %s6, %s4
  $region1: #{tpu_custom_call.1} parent=0
    #allocation2 [shape = 'u8[2048]{0}', space=vmem, size = 0x800, scoped, tag = 'input window, operand 0, single buffered']
    #allocation3 [shape = 's32[1]{0}', space=sflag, size = 0x4, scoped, tag = 'scoped memory for tpu_custom_call.1']
    #allocation4 [shape = 's32[1]{0}', space=sflag, size = 0x4, scoped, tag = 'scoped memory for tpu_custom_call.1']
    #allocation5 [shape = 'u8[32768]{0}', space=vmem, size = 0x8000, scoped, tag = 'input window, operand 1, single buffered']
    #allocation6 [shape = 's32[1]{0}', space=sflag, size = 0x4, scoped, tag = 'scoped memory for tpu_custom_call.1']
    #allocation7 [shape = 'u8[4096]{0}', space=vmem, size = 0x1000, scoped, tag = 'output window, operand 0, single buffered']
    %8 = vsyncpa [#allocation3], 0
    %9 = vsyncpa [#allocation6], 0
    %10 = vsyncpa [#allocation4], 0
    // Predicated region
    $region2: #{tpu_custom_call.1} parent=1 // pred_check
      _
    $region3: #{tpu_custom_call.1} parent=1 // pred_check_branch
      %12 = sbr.rel (0) target = $region5
    $region4: #{tpu_custom_call.1} parent=1 // pred_region
      %s14 = ssub.s32 64, 64
      %15 = vsyncadd [#allocation3], %s14
      %s17 = sshll.u32 [#allocation2], 4
      %s18 = int_to_ptr.vmem [resolvable:$true] %s17
      %20 = dma.hbm_to_vmem [thread:$0]  %s0, 64, %s18, [#allocation3]
    $region5: #{tpu_custom_call.1} parent=1 // pred_fallthru
      _
    // Predicated region
    $region6: #{tpu_custom_call.1} parent=1 // pred_check
      _
    $region7: #{tpu_custom_call.1} parent=1 // pred_check_branch
      %22 = sbr.rel (0) target = $region9
    $region8: #{tpu_custom_call.1} parent=1 // pred_region
      %s24 = ssub.s32 1024, 1024
      %25 = vsyncadd [#allocation6], %s24
      %s26 = sshll.u32 [#allocation5], 4
      %s27 = int_to_ptr.vmem [resolvable:$true] %s26
      %32 = dma.hbm_to_vmem [thread:$0]  %s1, 1024, %s27, [#allocation6], 64, 64, 4
    $region9: #{tpu_custom_call.1} parent=1 // pred_fallthru
      _
    // Predicated region
    $region10: #{tpu_custom_call.1} parent=1 // pred_check
      _
    $region11: #{tpu_custom_call.1} parent=1 // pred_check_branch
      %34 = sbr.rel (0) target = $region13
    $region12: #{tpu_custom_call.1} parent=1 // pred_region
      _
    $region13: #{tpu_custom_call.1} parent=1 // pred_fallthru
      _
    // Predicated region
    $region14: #{tpu_custom_call.1} parent=1 // pred_check
      _
    $region15: #{tpu_custom_call.1} parent=1 // pred_check_branch
      %36 = sbr.rel (0) target = $region17
    $region16: #{tpu_custom_call.1} parent=1 // pred_region
      %37 = dma.done [#allocation3], 64
    $region17: #{tpu_custom_call.1} parent=1 // pred_fallthru
      _
    // Predicated region
    $region18: #{tpu_custom_call.1} parent=1 // pred_check
      _
    $region19: #{tpu_custom_call.1} parent=1 // pred_check_branch
      %39 = sbr.rel (0) target = $region21
    $region20: #{tpu_custom_call.1} parent=1 // pred_region
      %40 = dma.done [#allocation6], 1024
    $region21: #{tpu_custom_call.1} parent=1 // pred_fallthru
      _
    %v42 = vld [vmem:[#allocation2] sm:$0xf]
    %v43 = vld [vmem:[#allocation5] sm:$0xf]
    %v44 = vld [vmem:[#allocation5 + $0x4] sm:$0xf]
    %v45 = vld [vmem:[#allocation5 + $0x8] sm:$0xf]
    %v46 = vld [vmem:[#allocation5 + $0xc] sm:$0xf]
    %v47 = vld [vmem:[#allocation5 + $0x10] sm:$0xf]
    %v48 = vld [vmem:[#allocation5 + $0x14] sm:$0xf]
    %v49 = vld [vmem:[#allocation5 + $0x18] sm:$0xf]
    %v50 = vld [vmem:[#allocation5 + $0x1c] sm:$0xf]
    %v51 = vld [vmem:[#allocation5 + $0x20] sm:$0xf]
    %v52 = vld [vmem:[#allocation5 + $0x24] sm:$0xf]
    %v53 = vld [vmem:[#allocation5 + $0x28] sm:$0xf]
    %v54 = vld [vmem:[#allocation5 + $0x2c] sm:$0xf]
    %v55 = vld [vmem:[#allocation5 + $0x30] sm:$0xf]
    %v56 = vld [vmem:[#allocation5 + $0x34] sm:$0xf]
    %v57 = vld [vmem:[#allocation5 + $0x38] sm:$0xf]
    %v58 = vld [vmem:[#allocation5 + $0x3c] sm:$0xf]
    %v75 = vunpack.c.l.b16 %v43
    %v76 = vunpack.c.l.b16 %v44
    %v77 = vunpack.c.l.b16 %v45
    %v78 = vunpack.c.l.b16 %v46
    %v79 = vunpack.c.l.b16 %v47
    %v80 = vunpack.c.l.b16 %v48
    %v81 = vunpack.c.l.b16 %v49
    %v82 = vunpack.c.l.b16 %v50
    %v83 = vunpack.c.l.b16 %v51
    %v84 = vunpack.c.l.b16 %v52
    %v85 = vunpack.c.l.b16 %v53
    %v86 = vunpack.c.l.b16 %v54
    %v87 = vunpack.c.l.b16 %v55
    %v88 = vunpack.c.l.b16 %v56
    %v89 = vunpack.c.l.b16 %v57
    %v90 = vunpack.c.l.b16 %v58
    %v91 = vpack.c.b16 %v76, %v75
    %v92 = vpack.c.b16 %v78, %v77
    %v93 = vpack.c.b16 %v80, %v79
    %v94 = vpack.c.b16 %v82, %v81
    %v95 = vpack.c.b16 %v84, %v83
    %v96 = vpack.c.b16 %v86, %v85
    %v97 = vpack.c.b16 %v88, %v87
    %v98 = vpack.c.b16 %v90, %v89
    %107 = vmatprep.subr.bf16.mxu0 0
    %108 = vmatpush1.bf16.msra.mxu0 %v98
    %109 = vmatprep.subr.bf16.mxu0 0
    %110 = vmatpush1.bf16.msra.mxu0 %v97
    %111 = vmatprep.subr.bf16.mxu0 0
    %112 = vmatpush1.bf16.msra.mxu0 %v96
    %113 = vmatprep.subr.bf16.mxu0 0
    %114 = vmatpush1.bf16.msra.mxu0 %v95
    %115 = vmatprep.subr.bf16.mxu0 0
    %116 = vmatpush1.bf16.msra.mxu0 %v94
    %117 = vmatprep.subr.bf16.mxu0 0
    %118 = vmatpush1.bf16.msra.mxu0 %v93
    %119 = vmatprep.subr.bf16.mxu0 0
    %120 = vmatpush1.bf16.msra.mxu0 %v92
    %121 = vmatprep.subr.bf16.mxu0 0
    %122 = vmatpush1.bf16.msra.mxu0 %v91
    %123 = vmatprep.subr.bf16.mxu0 0
    %124 = vmatpush2.bf16.msra.mxu0 0
    %125 = vmatprep.subr.bf16.mxu0 0
    %126 = vmatpush2.bf16.msra.mxu0 0
    %127 = vmatprep.subr.bf16.mxu0 0
    %128 = vmatpush2.bf16.msra.mxu0 0
    %129 = vmatprep.subr.bf16.mxu0 0
    %130 = vmatpush2.bf16.msra.mxu0 0
    %131 = vmatprep.subr.bf16.mxu0 0
    %132 = vmatpush2.bf16.msra.mxu0 0
    %133 = vmatprep.subr.bf16.mxu0 0
    %134 = vmatpush2.bf16.msra.mxu0 0
    %135 = vmatprep.subr.bf16.mxu0 0
    %136 = vmatpush2.bf16.msra.mxu0 0
    %137 = vmatprep.subr.bf16.mxu0 0
    %138 = vmatpush2.bf16.msra.mxu0 0
    %139 = vmatprep.mubr.bf16.mxu0 0
    %140 = vmatmul.mubr.bf16.gmra.mxu0 %v42
    %v141 = vpop.f32.mrf.mxu0
    %v142 = vadd.f32 0.0, %v141
    %v143 = vpop.f32.mrf.mxu0
    %v144 = vpop.f32.mrf.mxu0
    %v145 = vpop.f32.mrf.mxu0
    %146 = vdwg.mxu0
    %p147 = scmp.eq.s32.totalorder 0, 0
    // Predicated region
    $region22: #{tpu_custom_call.1} parent=1 // pred_check
      %p148 = pneg %p147
    $region23: #{tpu_custom_call.1} parent=1 // pred_check_branch
      %150 = sbr.rel (%p148) target = $region25
    $region24: #{tpu_custom_call.1} parent=1 // pred_region
      %151 = vst [vmem:[#allocation7] sm:$0xff] %v142
    $region25: #{tpu_custom_call.1} parent=1 // pred_fallthru
      _
    %p152 = scmp.gt.s32.totalorder 0, 0
    // Predicated region
    $region26: #{tpu_custom_call.1} parent=1 // pred_check
      %p153 = pneg %p152
    $region27: #{tpu_custom_call.1} parent=1 // pred_check_branch
      %155 = sbr.rel (%p153) target = $region29
    $region28: #{tpu_custom_call.1} parent=1 // pred_region
      %v156 = vld [vmem:[#allocation7] sm:$0xff]
      %v157 = vadd.f32 %v156, %v142
      %158 = vst [vmem:[#allocation7] sm:$0xff] %v157
    $region29: #{tpu_custom_call.1} parent=1 // pred_fallthru
      _
    // Predicated region
    $region30: #{tpu_custom_call.1} parent=1 // pred_check
      %p159 = pneg %p147
    $region31: #{tpu_custom_call.1} parent=1 // pred_check_branch
      %161 = sbr.rel (%p159) target = $region33
    $region32: #{tpu_custom_call.1} parent=1 // pred_region
      %v162 = vld [vmem:[#allocation7] sm:$0xff]
      %v163 = vld [vmem:[%s2] sm:$0x1]
      %v165 = vlaneseq
      %v166 = vshrl.u32 %v165, 7
      %v167 = vsub.s32 0, %v166
      %v168 = vrot.slane %v163, %v167
      %v170 = vadd.f32 %v162, %v168
      %v171 = vmax.f32 %v170, 0.0
      %172 = vst [vmem:[#allocation7] sm:$0xff] %v171
    $region33: #{tpu_custom_call.1} parent=1 // pred_fallthru
      _
    // Predicated region
    $region34: #{tpu_custom_call.1} parent=1 // pred_check
      _
    $region35: #{tpu_custom_call.1} parent=1 // pred_check_branch
      %174 = sbr.rel (0) target = $region37
    $region36: #{tpu_custom_call.1} parent=1 // pred_region
      %s176 = ssub.s32 128, 128
      %177 = vsyncadd [#allocation4], %s176
      %s179 = sshll.u32 [#allocation7], 4
      %s180 = int_to_ptr.vmem [resolvable:$true] %s179
      %182 = dma.vmem_to_hbm [thread:$0]  %s180, 128, %s3, [#allocation4]
    $region37: #{tpu_custom_call.1} parent=1 // pred_fallthru
      _
    // Predicated region
    $region38: #{tpu_custom_call.1} parent=1 // pred_check
      _
    $region39: #{tpu_custom_call.1} parent=1 // pred_check_branch
      %184 = sbr.rel (0) target = $region41
    $region40: #{tpu_custom_call.1} parent=1 // pred_region
      %185 = dma.done [#allocation4], 128
    $region41: #{tpu_custom_call.1} parent=1 // pred_fallthru
      _
    %186 = vsyncpa [#allocation3], 1
    %187 = vsyncpa [#allocation6], 1
    %188 = vsyncpa [#allocation4], 1

</llo_original>
